<compile_context>
chip_gen: v6e
topology: v6e:2x2x1
jax: 0.10.0
libtpu: 0.0.40
codegen_flags: <defaults>
</compile_context>

<pallas_src>
import jax
import jax.numpy as jnp
from jax.experimental import pallas as pl
from jax.experimental.pallas import tpu as pltpu


def _affine_kernel(x_ref, alpha_ref, beta_ref, o_ref):
    # Pure VPU elementwise op; (1, tile_cols) alpha/beta broadcast implicitly
    # over the (tile_rows, tile_cols) x block.  jnp promotion (e.g. bf16 x with
    # f32 params -> f32) happens in-register; o_ref already has the promoted
    # dtype so the cast on store is a no-op in the common case.
    o_ref[...] = (x_ref[...] * alpha_ref[...] + beta_ref[...]).astype(o_ref.dtype)


# Below ~128K elements the pallas_call launch + grid-step overhead loses to a
# single fused XLA op (crossover is far above one vreg of work).
_MIN_PALLAS_ELEMS = 128 * 1024


def _pick_tiles(rows, dim, itemsize_tile, itemsize_min, target_tile_bytes):
    """Pick (tile_rows, tile_cols): largest sublane-aligned tile <= target bytes.

    itemsize_tile: widest dtype among input/output (controls tile byte size).
    itemsize_min:  narrowest dtype (controls sublane-packing row multiple).
    """
    sublane = max(8, 32 // max(1, itemsize_min))  # 8 f32 / 16 bf16 / 32 int8

    # Column tiling only when even a minimal (sublane, dim) tile exceeds the
    # budget (very wide feature dims); otherwise keep the full lane-dense dim.
    if dim * itemsize_tile * sublane > target_tile_bytes and dim > 128:
        tile_cols = (target_tile_bytes // (sublane * itemsize_tile)) // 128 * 128
        tile_cols = int(max(128, min(tile_cols, dim)))
    else:
        tile_cols = dim

    tile_rows = target_tile_bytes // max(1, tile_cols * itemsize_tile)
    tile_rows = min(tile_rows, rows)
    tile_rows = (tile_rows // sublane) * sublane
    tile_rows = int(max(sublane, tile_rows))
    return tile_rows, tile_cols


def affine(x, alpha, beta, *, target_tile_bytes=4 << 20):
    """y = alpha * x + beta, broadcasting (dim,) alpha/beta over x's last axis."""
    orig_shape = x.shape
    dim = orig_shape[-1]
    assert alpha.shape == (dim,) and beta.shape == (dim,)

    # PyTorch promotion semantics: compute & return in the promoted dtype
    # (f32 params * bf16 x -> f32).  No param downcast before the multiply.
    out_dtype = jnp.result_type(x.dtype, alpha.dtype, beta.dtype)

    # Tiny-input fast path: let XLA fuse it into adjacent ops.
    if x.size < _MIN_PALLAS_ELEMS:
        return (x.astype(out_dtype) * alpha.astype(out_dtype)
                + beta.astype(out_dtype))

    x2d = x.reshape(-1, dim)
    rows = x2d.shape[0]

    # Lane-dense fold: if dim < 128 and divides 128, pack k rows into the lane
    # axis so the output last dim is a multiple of 128 (unmasked vst stores).
    rows_eff, dim_eff = rows, dim
    alpha_eff, beta_eff = alpha, beta
    if dim < 128 and (128 % dim == 0):
        k = 128 // dim
        if rows % k == 0:
            rows_eff = rows // k
            dim_eff = dim * k
            x2d = x2d.reshape(rows_eff, dim_eff)
            alpha_eff = jnp.tile(alpha, k)
            beta_eff = jnp.tile(beta, k)

    x_item = jnp.dtype(x.dtype).itemsize
    o_item = jnp.dtype(out_dtype).itemsize
    tile_rows, tile_cols = _pick_tiles(
        rows_eff, dim_eff, max(x_item, o_item), min(x_item, o_item),
        target_tile_bytes)

    # No padding / post-slice: grid covers cdiv(...) blocks and Pallas masks
    # the ragged last block, avoiding a full extra HBM round-trip of x and y.
    grid = (pl.cdiv(rows_eff, tile_rows), pl.cdiv(dim_eff, tile_cols))

    alpha2d = alpha_eff.reshape(1, dim_eff)
    beta2d = beta_eff.reshape(1, dim_eff)

    # Advisory cost estimate so XLA can schedule neighbors around the call.
    p_item = jnp.dtype(alpha_eff.dtype).itemsize
    cost = pl.CostEstimate(
        flops=2 * rows_eff * dim_eff,
        transcendentals=0,
        bytes_accessed=int(rows_eff * dim_eff * (x_item + o_item)
                           + 2 * dim_eff * p_item),
    )

    out = pl.pallas_call(
        _affine_kernel,
        out_shape=jax.ShapeDtypeStruct((rows_eff, dim_eff), out_dtype),
        grid=grid,
        in_specs=[
            pl.BlockSpec((tile_rows, tile_cols), lambda i, j: (i, j)),  # x (streamed)
            pl.BlockSpec((1, tile_cols), lambda i, j: (0, j)),          # alpha
            pl.BlockSpec((1, tile_cols), lambda i, j: (0, j)),          # beta
        ],
        out_specs=pl.BlockSpec((tile_rows, tile_cols), lambda i, j: (i, j)),
        compiler_params=pltpu.CompilerParams(
            # Both axes are independent; "parallel" lets multi-TC chips shard
            # grid steps across TensorCores.
            dimension_semantics=("parallel", "parallel"),
            # Covers 2x(input)+2x(output) double-buffered 4 MiB tiles plus the
            # resident alpha/beta blocks and internal scratch; fits v5e/v6e
            # (128 MiB physical VMEM) and v7x (64 MiB physical).
            vmem_limit_bytes=32 << 20,
        ),
        cost_estimate=cost,
    )(x2d, alpha2d, beta2d)

    if dim_eff != dim:
        out = out.reshape(rows, dim)
    return out.reshape(orig_shape[:-1] + (dim,))


if __name__ == "__main__":
    key = jax.random.PRNGKey(0)
    k1, k2, k3, k4, k5, k6 = jax.random.split(key, 6)

    def check(name, x, alpha, beta, tol=1e-5, **kw):
        y = jax.block_until_ready(affine(x, alpha, beta, **kw))
        y_ref = alpha * x + beta  # jnp promotion matches PyTorch promotion
        assert y.shape == y_ref.shape, f"{name}: shape {y.shape} vs {y_ref.shape}"
        assert y.dtype == y_ref.dtype, f"{name}: dtype {y.dtype} vs {y_ref.dtype}"
        assert jnp.allclose(y.astype(jnp.float32), y_ref.astype(jnp.float32),
                            atol=tol, rtol=tol), f"{name}: mismatch vs reference"

    # Case 1: module's own init (alpha=ones, beta=zeros), tiny shape
    # (2, 8, 32) -> tiny-input fast path (fused XLA).
    d = 32
    x_tiny = jax.random.normal(k1, (2, 8, d), dtype=jnp.float32)
    check("tiny", x_tiny, jnp.ones((d,), jnp.float32), jnp.zeros((d,), jnp.float32))

    # Case 2: narrow feature dim (32) -> lane-dense fold path; small tile
    # budget forces a multi-step grid with a ragged (masked) last row block.
    x_fold = jax.random.normal(k2, (8, 1040, d), dtype=jnp.float32)
    a_fold = jax.random.normal(k3, (d,), dtype=jnp.float32)
    b_fold = jax.random.normal(k4, (d,), dtype=jnp.float32)
    check("fold+ragged", x_fold, a_fold, b_fold, target_tile_bytes=256 << 10)

    # Case 3: bf16 activations with f32 params -> promoted f32 output,
    # f32 compute in-kernel (PyTorch promotion semantics), default 4 MiB tiles.
    d2 = 256
    x_bf16 = jax.random.normal(k5, (2, 520, d2), dtype=jnp.float32).astype(jnp.bfloat16)
    a2 = jnp.full((d2,), 1.5, jnp.float32)
    b2 = jnp.full((d2,), 0.25, jnp.float32)
    check("bf16_promote", x_bf16, a2, b2)

    # Case 4: very wide, non-128-multiple feature dim with a tiny tile budget
    # -> exercises the column-tiling fallback (2-D grid, ragged column block).
    d3 = 2200
    x_wide = jax.random.normal(k6, (1, 96, d3), dtype=jnp.float32)
    a3 = jax.random.normal(k3, (d3,), dtype=jnp.float32)
    b3 = jax.random.normal(k4, (d3,), dtype=jnp.float32)
    check("wide_cols", x_wide, a3, b3, target_tile_bytes=64 << 10)

    print("KERNEL_OK")
</pallas_src>

<mosaic_0001>
module attributes {stable_mosaic.version = 11 : i64} {
  func.func @_affine_kernel(%arg0: i32, %arg1: i32, %arg2: memref<512x128xf32, #tpu.memory_space<vmem>>, %arg3: memref<1x128xf32, #tpu.memory_space<vmem>>, %arg4: memref<1x128xf32, #tpu.memory_space<vmem>>, %arg5: memref<512x128xf32, #tpu.memory_space<vmem>>) attributes {dimension_semantics = [#tpu.dimension_semantics<parallel>, #tpu.dimension_semantics<parallel>], iteration_bounds = array<i64: 5, 1>, scalar_prefetch = 0 : i64, scratch_operands = 0 : i64, tpu.core_type = #tpu.core_type<tc>, window_params = [{transform_indices = @transform_0, window_bounds = array<i64: 512, 128>}, {transform_indices = @transform_1, window_bounds = array<i64: 1, 128>}, {transform_indices = @transform_2, window_bounds = array<i64: 1, 128>}, {transform_indices = @transform_3, window_bounds = array<i64: 512, 128>}]} {
    %c0 = arith.constant 0 : index
    %c0_0 = arith.constant 0 : index
    %0 = vector.load %arg2[%c0, %c0_0] : memref<512x128xf32, #tpu.memory_space<vmem>>, vector<512x128xf32>
    %c0_1 = arith.constant 0 : index
    %c0_2 = arith.constant 0 : index
    %1 = vector.load %arg3[%c0_1, %c0_2] : memref<1x128xf32, #tpu.memory_space<vmem>>, vector<1x128xf32>
    %2 = vector.broadcast %1 : vector<1x128xf32> to vector<512x128xf32>
    %3 = arith.mulf %0, %2 : vector<512x128xf32>
    %c0_3 = arith.constant 0 : index
    %c0_4 = arith.constant 0 : index
    %4 = vector.load %arg4[%c0_3, %c0_4] : memref<1x128xf32, #tpu.memory_space<vmem>>, vector<1x128xf32>
    %5 = vector.broadcast %4 : vector<1x128xf32> to vector<512x128xf32>
    %6 = arith.addf %3, %5 : vector<512x128xf32>
    %c0_5 = arith.constant 0 : index
    %c0_6 = arith.constant 0 : index
    %7 = vector.load %arg5[%c0_5, %c0_6] : memref<512x128xf32, #tpu.memory_space<vmem>>, vector<512x128xf32>
    tpu.vector_store %arg5[%c0_5, %c0_6], %6 {strides = array<i32>} : memref<512x128xf32, #tpu.memory_space<vmem>>, vector<512x128xf32>,
    return
  }
  func.func @transform_0(%arg0: i32, %arg1: i32) -> (i32, i32) {
    %c0_i32 = arith.constant 0 : i32
    return %arg0, %arg1 : i32, i32
  }
  func.func @transform_1(%arg0: i32, %arg1: i32) -> (i32, i32) {
    %c0_i32 = arith.constant 0 : i32
    %c0_i32_0 = arith.constant 0 : i32
    return %c0_i32, %arg1 : i32, i32
  }
  func.func @transform_2(%arg0: i32, %arg1: i32) -> (i32, i32) {
    %c0_i32 = arith.constant 0 : i32
    %c0_i32_0 = arith.constant 0 : i32
    return %c0_i32, %arg1 : i32, i32
  }
  func.func @transform_3(%arg0: i32, %arg1: i32) -> (i32, i32) {
    %c0_i32 = arith.constant 0 : i32
    return %arg0, %arg1 : i32, i32
  }
}

</mosaic_0001>

<llo_original>
// kernel: tpu_custom_call.1
$region0: #{tpu_custom_call.1}
  #allocation0 [shape = 'u32[]', space=smem, size = 0x4, offset = 0x4, fixed_abs, tag = 'smem constant byte address 0x4 - core index']
  #allocation1 [shape = 'u32[144,128]{1,0:T(1,128)}', space=vmem, size = 0x12000, scoped, tag = 'internal scratch']
  %s0 = inlined_call_operand.hbm [shape: f32[2080,128], index: 0, kind: input, shape index: {}]
  %s1 = inlined_call_operand.hbm [shape: f32[1,128], index: 1, kind: input, shape index: {}]
  %s2 = inlined_call_operand.hbm [shape: f32[1,128], index: 2, kind: input, shape index: {}]
  %s3 = inlined_call_operand.hbm [shape: f32[2080,128], index: 3, kind: output, shape index: {}]
  %s4 = sld [smem:[#allocation0]]
  $region57: #{tpu_custom_call.1} parent=0
    _
  %s6 = ssub.s32 1, %s4
  %s7 = scalar_select 0, %s6, %s4
  $region1: #{tpu_custom_call.1} parent=0
    #allocation2 [shape = 'u8[524288]{0}', space=vmem, size = 0x80000, scoped, tag = 'input window, operand 0']
    #allocation3 [shape = 's32[2]{0}', space=sflag, size = 0x8, scoped, tag = 'scoped memory for tpu_custom_call.1']
    #allocation4 [shape = 's32[2]{0}', space=sflag, size = 0x8, scoped, tag = 'scoped memory for tpu_custom_call.1']
    #allocation5 [shape = 'u8[512]{0}', space=vmem, size = 0x400, scoped, tag = 'input window, operand 1, single buffered']
    #allocation6 [shape = 's32[1]{0}', space=sflag, size = 0x4, scoped, tag = 'scoped memory for tpu_custom_call.1']
    #allocation7 [shape = 'u8[512]{0}', space=vmem, size = 0x400, scoped, tag = 'input window, operand 2, single buffered']
    #allocation8 [shape = 'u8[524288]{0}', space=vmem, size = 0x80000, scoped, tag = 'output window, operand 0']
    %8 = vsyncpa [#allocation3], 0
    %s9 = scalar_lea.sflag [#allocation3], 1
    %10 = vsyncpa %s9, 0
    %11 = vsyncpa [#allocation6], 0
    %12 = vsyncpa [#allocation4], 0
    %s13 = scalar_lea.sflag [#allocation4], 1
    %14 = vsyncpa %s13, 0
    loop: start=0, step=1, limit=7
    $region2: #{tpu_custom_call.1} parent=1 // loop_pre_header
      _
    $region3: #{tpu_custom_call.1} parent=1 // loop_header
      %s16 = sphi 0, %s20
      %p17 = scmp.ge.s32.totalorder %s16, 7
      %s23 = sphi 0, %s35
      %s24 = sphi 0, %s31
      %s25 = sphi 0, %s23
      %s26 = sphi 0, %s24
      %s27 = sphi 0, %s25
      %s28 = sphi 0, %s26
      %s40 = sphi 0, %s42
      %s43 = sphi 0, %s40
      %s44 = sphi 0, %s43
      %s60 = sphi 0, %s44
      %s66 = sphi 0, %s68
      %s69 = sphi 0, %s66
      %s70 = sphi 0, %s69
      %s86 = sphi 0, %s70
      %s92 = sphi 0, %s94
      %s95 = sphi 0, %s92
      %s96 = sphi 0, %s95
      %s112 = sphi 0, %s96
      %s120 = sphi 0, %s122
      %s123 = sphi 0, %s120
      %s124 = sphi 0, %s123
      %s140 = sphi 0, %s124
    $region4: #{tpu_custom_call.1} parent=1 // loop_header_branch
      %19 = sbr.rel (%p17) target = $region8
    $region5: #{tpu_custom_call.1} parent=1 // loop_body
      %s21 = ssub.s32 %s16, 1
      %s22 = ssub.s32 %s16, 2
      %s29 = sadd.s32 1, %s24
      %p30 = scmp.ge.s32.totalorder %s29, 1
      %s31 = scalar_select %p30, 0, %s29
      %s32 = sadd.s32 1, %s23
      %s33 = scalar_select %p30, %s32, %s23
      %p34 = scmp.ge.s32.totalorder %s33, 5
      %s35 = scalar_select %p34, 0, %s33
      %s36 = ssub.s32 %s23, %s35
      %s37 = ssub.s32 %s24, %s31
      %s38 = sor.u32 %s36, %s37
      %p39 = scmp.eq.s32.totalorder %s38, 0
      %s41 = sadd.s32 %s40, 1
      %s42 = scalar_select %p39, %s40, %s41
      %p45 = pneg %p39
      %p46 = scmp.eq.s32.totalorder %s16, 4
      %p47 = por %p45, %p46
      %p48 = scmp.ne.s32.totalorder %s40, %s43
      %p49 = scmp.eq.s32.totalorder %s16, 0
      %p50 = por %p48, %p49
      %p51 = scmp.ne.s32.totalorder %s40, %s43
      %p52 = scmp.eq.s32.totalorder %s21, 4
      %p53 = por %p51, %p52
      %p54 = scmp.ne.s32.totalorder %s43, %s44
      %p55 = scmp.eq.s32.totalorder %s21, 0
      %p56 = por %p54, %p55
      %p57 = scmp.ne.s32.totalorder %s43, %s44
      %p58 = scmp.eq.s32.totalorder %s22, 4
      %p59 = por %p57, %p58
      %p61 = scmp.ne.s32.totalorder %s44, %s60
      %p62 = scmp.eq.s32.totalorder %s22, 0
      %p63 = por %p61, %p62
      %s64 = ssub.s32 %s24, %s31
      %p65 = scmp.eq.s32.totalorder %s64, 0
      %s67 = sadd.s32 %s66, 1
      %s68 = scalar_select %p65, %s66, %s67
      %p71 = pneg %p65
      %p72 = scmp.eq.s32.totalorder %s16, 4
      %p73 = por %p71, %p72
      %p74 = scmp.ne.s32.totalorder %s66, %s69
      %p75 = scmp.eq.s32.totalorder %s16, 0
      %p76 = por %p74, %p75
      %p77 = scmp.ne.s32.totalorder %s66, %s69
      %p78 = scmp.eq.s32.totalorder %s21, 4
      %p79 = por %p77, %p78
      %p80 = scmp.ne.s32.totalorder %s69, %s70
      %p81 = scmp.eq.s32.totalorder %s21, 0
      %p82 = por %p80, %p81
      %p83 = scmp.ne.s32.totalorder %s69, %s70
      %p84 = scmp.eq.s32.totalorder %s22, 4
      %p85 = por %p83, %p84
      %p87 = scmp.ne.s32.totalorder %s70, %s86
      %p88 = scmp.eq.s32.totalorder %s22, 0
      %p89 = por %p87, %p88
      %s90 = ssub.s32 %s24, %s31
      %p91 = scmp.eq.s32.totalorder %s90, 0
      %s93 = sadd.s32 %s92, 1
      %s94 = scalar_select %p91, %s92, %s93
      %p97 = pneg %p91
      %p98 = scmp.eq.s32.totalorder %s16, 4
      %p99 = por %p97, %p98
      %p100 = scmp.ne.s32.totalorder %s92, %s95
      %p101 = scmp.eq.s32.totalorder %s16, 0
      %p102 = por %p100, %p101
      %p103 = scmp.ne.s32.totalorder %s92, %s95
      %p104 = scmp.eq.s32.totalorder %s21, 4
      %p105 = por %p103, %p104
      %p106 = scmp.ne.s32.totalorder %s95, %s96
      %p107 = scmp.eq.s32.totalorder %s21, 0
      %p108 = por %p106, %p107
      %p109 = scmp.ne.s32.totalorder %s95, %s96
      %p110 = scmp.eq.s32.totalorder %s22, 4
      %p111 = por %p109, %p110
      %p113 = scmp.ne.s32.totalorder %s96, %s112
      %p114 = scmp.eq.s32.totalorder %s22, 0
      %p115 = por %p113, %p114
      %s116 = ssub.s32 %s23, %s35
      %s117 = ssub.s32 %s24, %s31
      %s118 = sor.u32 %s116, %s117
      %p119 = scmp.eq.s32.totalorder %s118, 0
      %s121 = sadd.s32 %s120, 1
      %s122 = scalar_select %p119, %s120, %s121
      %p125 = pneg %p119
      %p126 = scmp.eq.s32.totalorder %s16, 4
      %p127 = por %p125, %p126
      %p128 = scmp.ne.s32.totalorder %s120, %s123
      %p129 = scmp.eq.s32.totalorder %s16, 0
      %p130 = por %p128, %p129
      %p131 = scmp.ne.s32.totalorder %s120, %s123
      %p132 = scmp.eq.s32.totalorder %s21, 4
      %p133 = por %p131, %p132
      %p134 = scmp.ne.s32.totalorder %s123, %s124
      %p135 = scmp.eq.s32.totalorder %s21, 0
      %p136 = por %p134, %p135
      %p137 = scmp.ne.s32.totalorder %s123, %s124
      %p138 = scmp.eq.s32.totalorder %s22, 4
      %p139 = por %p137, %p138
      %p141 = scmp.ne.s32.totalorder %s124, %s140
      %p142 = scmp.eq.s32.totalorder %s22, 0
      %p143 = por %p141, %p142
      %p144 = scmp.le.s32.totalorder 1, %s16
      %p145 = scmp.lt.s32.totalorder %s16, 6
      %p146 = pnand %p144, %p145
      %p147 = pneg %p146
      // Predicated region
      $region9: #{tpu_custom_call.1} parent=5 // pred_check
        _
      $region10: #{tpu_custom_call.1} parent=5 // pred_check_branch
        %149 = sbr.rel (%p146) target = $region12
      $region11: #{tpu_custom_call.1} parent=5 // pred_region
        %s150 = ssub.s32 %s16, 1
        // Predicated region
        $region13: #{tpu_custom_call.1} parent=11 // pred_check
          %p151 = pneg %p82
        $region14: #{tpu_custom_call.1} parent=11 // pred_check_branch
          %153 = sbr.rel (%p151) target = $region16
        $region15: #{tpu_custom_call.1} parent=11 // pred_region
          %s155 = ssub.s32 16, 16
          %156 = vsyncadd [#allocation6], %s155
          %s157 = smul.addr %s26, 16
          %s158 = scalar_lea.hbm %s1, %s157
          %s160 = sshll.u32 [#allocation5], 4
          %s161 = int_to_ptr.vmem [resolvable:$true] %s160
          %163 = dma.hbm_to_vmem [thread:$0]  %s158, 16, %s161, [#allocation6]
        $region16: #{tpu_custom_call.1} parent=11 // pred_fallthru
          _
        // Predicated region
        $region17: #{tpu_custom_call.1} parent=11 // pred_check
          %p164 = pneg %p108
        $region18: #{tpu_custom_call.1} parent=11 // pred_check_branch
          %166 = sbr.rel (%p164) target = $region20
        $region19: #{tpu_custom_call.1} parent=11 // pred_region
          %s168 = ssub.s32 16, 16
          %169 = vsyncadd [#allocation6], %s168
          %s170 = smul.addr %s26, 16
          %s171 = scalar_lea.hbm %s2, %s170
          %s173 = sshll.u32 [#allocation7], 4
          %s174 = int_to_ptr.vmem [resolvable:$true] %s173
          %176 = dma.hbm_to_vmem [thread:$0]  %s171, 16, %s174, [#allocation6]
        $region20: #{tpu_custom_call.1} parent=11 // pred_fallthru
          _
      $region12: #{tpu_custom_call.1} parent=5 // pred_fallthru
        _
      %p177 = scmp.lt.s32.totalorder %s16, 5
      // Predicated region
      $region21: #{tpu_custom_call.1} parent=5 // pred_check
        %p178 = pneg %p177
      $region22: #{tpu_custom_call.1} parent=5 // pred_check_branch
        %180 = sbr.rel (%p178) target = $region24
      $region23: #{tpu_custom_call.1} parent=5 // pred_region
        // Predicated region
        $region25: #{tpu_custom_call.1} parent=23 // pred_check
          %p181 = pneg %p50
        $region26: #{tpu_custom_call.1} parent=23 // pred_check_branch
          %183 = sbr.rel (%p181) target = $region28
        $region27: #{tpu_custom_call.1} parent=23 // pred_region
          %s184 = sand.u32 %s40, 1
          %s185 = scalar_lea.sflag [#allocation3], %s184
          %s186 = sand.u32 %s40, 1
          %s187 = smul.addr %s186, 512
          %s188 = scalar_lea.vmem [#allocation2], %s187
          %s189 = smul.u32 64, %s23
          %s190 = ssub.s32 260, %s189
          %p191 = scmp.lt.s32.totalorder %s190, 64
          %s192 = scalar_select %p191, %s190, 64
          %s193 = smul.u32 128, %s192
          %s195 = ssub.s32 8192, %s193
          %196 = vsyncadd %s185, %s195
          %p197 = scmp.ne.s32.totalorder 0, %s193
          %s198 = sadd.s32 %s24, %s189
          %s199 = smul.addr %s198, 128
          %s200 = scalar_lea.hbm %s0, %s199
          %s201 = smul.u32 8, %s192
          %s202 = sshll.u32 %s188, 4
          %s203 = int_to_ptr.vmem [resolvable:$true] %s202
          %s204 = sshll.u32 %s201, 4
          %208 = dma.hbm_to_vmem [thread:$0]  (%p197), %s200, %s204, %s203, %s185, 128, 128, 8
        $region28: #{tpu_custom_call.1} parent=23 // pred_fallthru
          _
      $region24: #{tpu_custom_call.1} parent=5 // pred_fallthru
        _
      %p209 = scmp.le.s32.totalorder 1, %s16
      %p210 = scmp.lt.s32.totalorder %s16, 6
      %p211 = pnand %p209, %p210
      %p212 = pneg %p211
      // Predicated region
      $region29: #{tpu_custom_call.1} parent=5 // pred_check
        _
      $region30: #{tpu_custom_call.1} parent=5 // pred_check_branch
        %214 = sbr.rel (%p211) target = $region32
      $region31: #{tpu_custom_call.1} parent=5 // pred_region
        %s215 = ssub.s32 %s16, 1
        %s216 = sand.u32 %s43, 1
        %s217 = scalar_lea.sflag [#allocation3], %s216
        %s218 = sand.u32 %s43, 1
        %s219 = smul.addr %s218, 512
        %s220 = scalar_lea.vmem [#allocation2], %s219
        // Predicated region
        $region33: #{tpu_custom_call.1} parent=31 // pred_check
          %p221 = pneg %p56
        $region34: #{tpu_custom_call.1} parent=31 // pred_check_branch
          %223 = sbr.rel (%p221) target = $region36
        $region35: #{tpu_custom_call.1} parent=31 // pred_region
          %224 = dma.done %s217, 8192
        $region36: #{tpu_custom_call.1} parent=31 // pred_fallthru
          _
        // Predicated region
        $region37: #{tpu_custom_call.1} parent=31 // pred_check
          %p225 = pneg %p82
        $region38: #{tpu_custom_call.1} parent=31 // pred_check_branch
          %227 = sbr.rel (%p225) target = $region40
        $region39: #{tpu_custom_call.1} parent=31 // pred_region
          %228 = dma.done [#allocation6], 16
        $region40: #{tpu_custom_call.1} parent=31 // pred_fallthru
          _
        // Predicated region
        $region41: #{tpu_custom_call.1} parent=31 // pred_check
          %p229 = pneg %p108
        $region42: #{tpu_custom_call.1} parent=31 // pred_check_branch
          %231 = sbr.rel (%p229) target = $region44
        $region43: #{tpu_custom_call.1} parent=31 // pred_region
          %232 = dma.done [#allocation6], 16
        $region44: #{tpu_custom_call.1} parent=31 // pred_fallthru
          _
        %s233 = sand.u32 %s43, 1
        %s234 = scalar_lea.sflag [#allocation3], %s233
        %s235 = sand.u32 %s43, 1
        %s236 = smul.addr %s235, 512
        %s237 = scalar_lea.vmem [#allocation2], %s236
        %p238 = pneg %p56
        %p239 = pneg %p53
        %p240 = pneg %p82
        %p241 = pneg %p79
        %p242 = pneg %p108
        %p243 = pneg %p105
        %p244 = pneg %p136
        %p245 = pneg %p133
        %s246 = sand.u32 %s123, 1
        %s247 = scalar_lea.sflag [#allocation4], %s246
        %s248 = sand.u32 %s123, 1
        %s249 = smul.addr %s248, 512
        %s250 = scalar_lea.vmem [#allocation8], %s249
        %s251 = smul.u32 64, %s25
        %s252 = ssub.s32 260, %s251
        %p253 = scmp.lt.s32.totalorder %s252, 64
        %s254 = scalar_select %p253, %s252, 64
        %s255 = smul.u32 128, %s254
        %s256 = smul.u32 64, %s25
        %s257 = ssub.s32 260, %s256
        %p258 = scmp.lt.s32.totalorder %s257, 64
        %s259 = scalar_select %p258, %s257, 64
        %s260 = smul.u32 128, %s259
        %v261 = vld [vmem:[%s220] sm:$0xff]
        %v262 = vld [vmem:[%s220 + $0x8] sm:$0xff]
        %v263 = vld [vmem:[%s220 + $0x10] sm:$0xff]
        %v264 = vld [vmem:[%s220 + $0x18] sm:$0xff]
        %v265 = vld [vmem:[%s220 + $0x20] sm:$0xff]
        %v266 = vld [vmem:[%s220 + $0x28] sm:$0xff]
        %v267 = vld [vmem:[%s220 + $0x30] sm:$0xff]
        %v268 = vld [vmem:[%s220 + $0x38] sm:$0xff]
        %v269 = vld [vmem:[%s220 + $0x40] sm:$0xff]
        %v270 = vld [vmem:[%s220 + $0x48] sm:$0xff]
        %v271 = vld [vmem:[%s220 + $0x50] sm:$0xff]
        %v272 = vld [vmem:[%s220 + $0x58] sm:$0xff]
        %v273 = vld [vmem:[%s220 + $0x60] sm:$0xff]
        %v274 = vld [vmem:[%s220 + $0x68] sm:$0xff]
        %v275 = vld [vmem:[%s220 + $0x70] sm:$0xff]
        %v276 = vld [vmem:[%s220 + $0x78] sm:$0xff]
        %v277 = vld [vmem:[%s220 + $0x80] sm:$0xff]
        %v278 = vld [vmem:[%s220 + $0x88] sm:$0xff]
        %v279 = vld [vmem:[%s220 + $0x90] sm:$0xff]
        %v280 = vld [vmem:[%s220 + $0x98] sm:$0xff]
        %v281 = vld [vmem:[%s220 + $0xa0] sm:$0xff]
        %v282 = vld [vmem:[%s220 + $0xa8] sm:$0xff]
        %v283 = vld [vmem:[%s220 + $0xb0] sm:$0xff]
        %v284 = vld [vmem:[%s220 + $0xb8] sm:$0xff]
        %v285 = vld [vmem:[%s220 + $0xc0] sm:$0xff]
        %v286 = vld [vmem:[%s220 + $0xc8] sm:$0xff]
        %v287 = vld [vmem:[%s220 + $0xd0] sm:$0xff]
        %v288 = vld [vmem:[%s220 + $0xd8] sm:$0xff]
        %v289 = vld [vmem:[%s220 + $0xe0] sm:$0xff]
        %v290 = vld [vmem:[%s220 + $0xe8] sm:$0xff]
        %v291 = vld [vmem:[%s220 + $0xf0] sm:$0xff]
        %v292 = vld [vmem:[%s220 + $0xf8] sm:$0xff]
        %v293 = vld [vmem:[%s220 + $0x100] sm:$0xff]
        %v294 = vld [vmem:[%s220 + $0x108] sm:$0xff]
        %v295 = vld [vmem:[%s220 + $0x110] sm:$0xff]
        %v296 = vld [vmem:[%s220 + $0x118] sm:$0xff]
        %v297 = vld [vmem:[%s220 + $0x120] sm:$0xff]
        %v298 = vld [vmem:[%s220 + $0x128] sm:$0xff]
        %v299 = vld [vmem:[%s220 + $0x130] sm:$0xff]
        %v300 = vld [vmem:[%s220 + $0x138] sm:$0xff]
        %v301 = vld [vmem:[%s220 + $0x140] sm:$0xff]
        %v302 = vld [vmem:[%s220 + $0x148] sm:$0xff]
        %v303 = vld [vmem:[%s220 + $0x150] sm:$0xff]
        %v304 = vld [vmem:[%s220 + $0x158] sm:$0xff]
        %v305 = vld [vmem:[%s220 + $0x160] sm:$0xff]
        %v306 = vld [vmem:[%s220 + $0x168] sm:$0xff]
        %v307 = vld [vmem:[%s220 + $0x170] sm:$0xff]
        %v308 = vld [vmem:[%s220 + $0x178] sm:$0xff]
        %v309 = vld [vmem:[%s220 + $0x180] sm:$0xff]
        %v310 = vld [vmem:[%s220 + $0x188] sm:$0xff]
        %v311 = vld [vmem:[%s220 + $0x190] sm:$0xff]
        %v312 = vld [vmem:[%s220 + $0x198] sm:$0xff]
        %v313 = vld [vmem:[%s220 + $0x1a0] sm:$0xff]
        %v314 = vld [vmem:[%s220 + $0x1a8] sm:$0xff]
        %v315 = vld [vmem:[%s220 + $0x1b0] sm:$0xff]
        %v316 = vld [vmem:[%s220 + $0x1b8] sm:$0xff]
        %v317 = vld [vmem:[%s220 + $0x1c0] sm:$0xff]
        %v318 = vld [vmem:[%s220 + $0x1c8] sm:$0xff]
        %v319 = vld [vmem:[%s220 + $0x1d0] sm:$0xff]
        %v320 = vld [vmem:[%s220 + $0x1d8] sm:$0xff]
        %v321 = vld [vmem:[%s220 + $0x1e0] sm:$0xff]
        %v322 = vld [vmem:[%s220 + $0x1e8] sm:$0xff]
        %v323 = vld [vmem:[%s220 + $0x1f0] sm:$0xff]
        %v324 = vld [vmem:[%s220 + $0x1f8] sm:$0xff]
        %v325 = vld [vmem:[#allocation5] sm:$0x1]
        %v327 = vlaneseq
        %v328 = vshrl.u32 %v327, 7
        %v329 = vsub.s32 0, %v328
        %v330 = vrot.slane %v325, %v329
        %v332 = vmul.f32 %v261, %v330
        %v333 = vmul.f32 %v262, %v330
        %v334 = vmul.f32 %v263, %v330
        %v335 = vmul.f32 %v264, %v330
        %v336 = vmul.f32 %v265, %v330
        %v337 = vmul.f32 %v266, %v330
        %v338 = vmul.f32 %v267, %v330
        %v339 = vmul.f32 %v268, %v330
        %v340 = vmul.f32 %v269, %v330
        %v341 = vmul.f32 %v270, %v330
        %v342 = vmul.f32 %v271, %v330
        %v343 = vmul.f32 %v272, %v330
        %v344 = vmul.f32 %v273, %v330
        %v345 = vmul.f32 %v274, %v330
        %v346 = vmul.f32 %v275, %v330
        %v347 = vmul.f32 %v276, %v330
        %v348 = vmul.f32 %v277, %v330
        %v349 = vmul.f32 %v278, %v330
        %v350 = vmul.f32 %v279, %v330
        %v351 = vmul.f32 %v280, %v330
        %v352 = vmul.f32 %v281, %v330
        %v353 = vmul.f32 %v282, %v330
        %v354 = vmul.f32 %v283, %v330
        %v355 = vmul.f32 %v284, %v330
        %v356 = vmul.f32 %v285, %v330
        %v357 = vmul.f32 %v286, %v330
        %v358 = vmul.f32 %v287, %v330
        %v359 = vmul.f32 %v288, %v330
        %v360 = vmul.f32 %v289, %v330
        %v361 = vmul.f32 %v290, %v330
        %v362 = vmul.f32 %v291, %v330
        %v363 = vmul.f32 %v292, %v330
        %v364 = vmul.f32 %v293, %v330
        %v365 = vmul.f32 %v294, %v330
        %v366 = vmul.f32 %v295, %v330
        %v367 = vmul.f32 %v296, %v330
        %v368 = vmul.f32 %v297, %v330
        %v369 = vmul.f32 %v298, %v330
        %v370 = vmul.f32 %v299, %v330
        %v371 = vmul.f32 %v300, %v330
        %v372 = vmul.f32 %v301, %v330
        %v373 = vmul.f32 %v302, %v330
        %v374 = vmul.f32 %v303, %v330
        %v375 = vmul.f32 %v304, %v330
        %v376 = vmul.f32 %v305, %v330
        %v377 = vmul.f32 %v306, %v330
        %v378 = vmul.f32 %v307, %v330
        %v379 = vmul.f32 %v308, %v330
        %v380 = vmul.f32 %v309, %v330
        %v381 = vmul.f32 %v310, %v330
        %v382 = vmul.f32 %v311, %v330
        %v383 = vmul.f32 %v312, %v330
        %v384 = vmul.f32 %v313, %v330
        %v385 = vmul.f32 %v314, %v330
        %v386 = vmul.f32 %v315, %v330
        %v387 = vmul.f32 %v316, %v330
        %v388 = vmul.f32 %v317, %v330
        %v389 = vmul.f32 %v318, %v330
        %v390 = vmul.f32 %v319, %v330
        %v391 = vmul.f32 %v320, %v330
        %v392 = vmul.f32 %v321, %v330
        %v393 = vmul.f32 %v322, %v330
        %v394 = vmul.f32 %v323, %v330
        %v395 = vmul.f32 %v324, %v330
        %v396 = vld [vmem:[#allocation7] sm:$0x1]
        %v398 = vlaneseq
        %v399 = vshrl.u32 %v398, 7
        %v400 = vsub.s32 0, %v399
        %v401 = vrot.slane %v396, %v400
        %v403 = vadd.f32 %v332, %v401
        %v404 = vadd.f32 %v333, %v401
        %v405 = vadd.f32 %v334, %v401
        %v406 = vadd.f32 %v335, %v401
        %v407 = vadd.f32 %v336, %v401
        %v408 = vadd.f32 %v337, %v401
        %v409 = vadd.f32 %v338, %v401
        %v410 = vadd.f32 %v339, %v401
        %v411 = vadd.f32 %v340, %v401
        %v412 = vadd.f32 %v341, %v401
        %v413 = vadd.f32 %v342, %v401
        %v414 = vadd.f32 %v343, %v401
        %v415 = vadd.f32 %v344, %v401
        %v416 = vadd.f32 %v345, %v401
        %v417 = vadd.f32 %v346, %v401
        %v418 = vadd.f32 %v347, %v401
        %v419 = vadd.f32 %v348, %v401
        %v420 = vadd.f32 %v349, %v401
        %v421 = vadd.f32 %v350, %v401
        %v422 = vadd.f32 %v351, %v401
        %v423 = vadd.f32 %v352, %v401
        %v424 = vadd.f32 %v353, %v401
        %v425 = vadd.f32 %v354, %v401
        %v426 = vadd.f32 %v355, %v401
        %v427 = vadd.f32 %v356, %v401
        %v428 = vadd.f32 %v357, %v401
        %v429 = vadd.f32 %v358, %v401
        %v430 = vadd.f32 %v359, %v401
        %v431 = vadd.f32 %v360, %v401
        %v432 = vadd.f32 %v361, %v401
        %v433 = vadd.f32 %v362, %v401
        %v434 = vadd.f32 %v363, %v401
        %v435 = vadd.f32 %v364, %v401
        %v436 = vadd.f32 %v365, %v401
        %v437 = vadd.f32 %v366, %v401
        %v438 = vadd.f32 %v367, %v401
        %v439 = vadd.f32 %v368, %v401
        %v440 = vadd.f32 %v369, %v401
        %v441 = vadd.f32 %v370, %v401
        %v442 = vadd.f32 %v371, %v401
        %v443 = vadd.f32 %v372, %v401
        %v444 = vadd.f32 %v373, %v401
        %v445 = vadd.f32 %v374, %v401
        %v446 = vadd.f32 %v375, %v401
        %v447 = vadd.f32 %v376, %v401
        %v448 = vadd.f32 %v377, %v401
        %v449 = vadd.f32 %v378, %v401
        %v450 = vadd.f32 %v379, %v401
        %v451 = vadd.f32 %v380, %v401
        %v452 = vadd.f32 %v381, %v401
        %v453 = vadd.f32 %v382, %v401
        %v454 = vadd.f32 %v383, %v401
        %v455 = vadd.f32 %v384, %v401
        %v456 = vadd.f32 %v385, %v401
        %v457 = vadd.f32 %v386, %v401
        %v458 = vadd.f32 %v387, %v401
        %v459 = vadd.f32 %v388, %v401
        %v460 = vadd.f32 %v389, %v401
        %v461 = vadd.f32 %v390, %v401
        %v462 = vadd.f32 %v391, %v401
        %v463 = vadd.f32 %v392, %v401
        %v464 = vadd.f32 %v393, %v401
        %v465 = vadd.f32 %v394, %v401
        %v466 = vadd.f32 %v395, %v401
        %467 = vst [vmem:[%s250] sm:$0xff] %v403
        %468 = vst [vmem:[%s250 + $0x8] sm:$0xff] %v404
        %469 = vst [vmem:[%s250 + $0x10] sm:$0xff] %v405
        %470 = vst [vmem:[%s250 + $0x18] sm:$0xff] %v406
        %471 = vst [vmem:[%s250 + $0x20] sm:$0xff] %v407
        %472 = vst [vmem:[%s250 + $0x28] sm:$0xff] %v408
        %473 = vst [vmem:[%s250 + $0x30] sm:$0xff] %v409
        %474 = vst [vmem:[%s250 + $0x38] sm:$0xff] %v410
        %475 = vst [vmem:[%s250 + $0x40] sm:$0xff] %v411
        %476 = vst [vmem:[%s250 + $0x48] sm:$0xff] %v412
        %477 = vst [vmem:[%s250 + $0x50] sm:$0xff] %v413
        %478 = vst [vmem:[%s250 + $0x58] sm:$0xff] %v414
        %479 = vst [vmem:[%s250 + $0x60] sm:$0xff] %v415
        %480 = vst [vmem:[%s250 + $0x68] sm:$0xff] %v416
        %481 = vst [vmem:[%s250 + $0x70] sm:$0xff] %v417
        %482 = vst [vmem:[%s250 + $0x78] sm:$0xff] %v418
        %483 = vst [vmem:[%s250 + $0x80] sm:$0xff] %v419
        %484 = vst [vmem:[%s250 + $0x88] sm:$0xff] %v420
        %485 = vst [vmem:[%s250 + $0x90] sm:$0xff] %v421
        %486 = vst [vmem:[%s250 + $0x98] sm:$0xff] %v422
        %487 = vst [vmem:[%s250 + $0xa0] sm:$0xff] %v423
        %488 = vst [vmem:[%s250 + $0xa8] sm:$0xff] %v424
        %489 = vst [vmem:[%s250 + $0xb0] sm:$0xff] %v425
        %490 = vst [vmem:[%s250 + $0xb8] sm:$0xff] %v426
        %491 = vst [vmem:[%s250 + $0xc0] sm:$0xff] %v427
        %492 = vst [vmem:[%s250 + $0xc8] sm:$0xff] %v428
        %493 = vst [vmem:[%s250 + $0xd0] sm:$0xff] %v429
        %494 = vst [vmem:[%s250 + $0xd8] sm:$0xff] %v430
        %495 = vst [vmem:[%s250 + $0xe0] sm:$0xff] %v431
        %496 = vst [vmem:[%s250 + $0xe8] sm:$0xff] %v432
        %497 = vst [vmem:[%s250 + $0xf0] sm:$0xff] %v433
        %498 = vst [vmem:[%s250 + $0xf8] sm:$0xff] %v434
        %499 = vst [vmem:[%s250 + $0x100] sm:$0xff] %v435
        %500 = vst [vmem:[%s250 + $0x108] sm:$0xff] %v436
        %501 = vst [vmem:[%s250 + $0x110] sm:$0xff] %v437
        %502 = vst [vmem:[%s250 + $0x118] sm:$0xff] %v438
        %503 = vst [vmem:[%s250 + $0x120] sm:$0xff] %v439
        %504 = vst [vmem:[%s250 + $0x128] sm:$0xff] %v440
        %505 = vst [vmem:[%s250 + $0x130] sm:$0xff] %v441
        %506 = vst [vmem:[%s250 + $0x138] sm:$0xff] %v442
        %507 = vst [vmem:[%s250 + $0x140] sm:$0xff] %v443
        %508 = vst [vmem:[%s250 + $0x148] sm:$0xff] %v444
        %509 = vst [vmem:[%s250 + $0x150] sm:$0xff] %v445
        %510 = vst [vmem:[%s250 + $0x158] sm:$0xff] %v446
        %511 = vst [vmem:[%s250 + $0x160] sm:$0xff] %v447
        %512 = vst [vmem:[%s250 + $0x168] sm:$0xff] %v448
        %513 = vst [vmem:[%s250 + $0x170] sm:$0xff] %v449
        %514 = vst [vmem:[%s250 + $0x178] sm:$0xff] %v450
        %515 = vst [vmem:[%s250 + $0x180] sm:$0xff] %v451
        %516 = vst [vmem:[%s250 + $0x188] sm:$0xff] %v452
        %517 = vst [vmem:[%s250 + $0x190] sm:$0xff] %v453
        %518 = vst [vmem:[%s250 + $0x198] sm:$0xff] %v454
        %519 = vst [vmem:[%s250 + $0x1a0] sm:$0xff] %v455
        %520 = vst [vmem:[%s250 + $0x1a8] sm:$0xff] %v456
        %521 = vst [vmem:[%s250 + $0x1b0] sm:$0xff] %v457
        %522 = vst [vmem:[%s250 + $0x1b8] sm:$0xff] %v458
        %523 = vst [vmem:[%s250 + $0x1c0] sm:$0xff] %v459
        %524 = vst [vmem:[%s250 + $0x1c8] sm:$0xff] %v460
        %525 = vst [vmem:[%s250 + $0x1d0] sm:$0xff] %v461
        %526 = vst [vmem:[%s250 + $0x1d8] sm:$0xff] %v462
        %527 = vst [vmem:[%s250 + $0x1e0] sm:$0xff] %v463
        %528 = vst [vmem:[%s250 + $0x1e8] sm:$0xff] %v464
        %529 = vst [vmem:[%s250 + $0x1f0] sm:$0xff] %v465
        %530 = vst [vmem:[%s250 + $0x1f8] sm:$0xff] %v466
        %s531 = sand.u32 %s123, 1
        %s532 = scalar_lea.sflag [#allocation4], %s531
        %s533 = sand.u32 %s123, 1
        %s534 = smul.addr %s533, 512
        %s535 = scalar_lea.vmem [#allocation8], %s534
        // Predicated region
        $region45: #{tpu_custom_call.1} parent=31 // pred_check
          %p536 = pneg %p133
        $region46: #{tpu_custom_call.1} parent=31 // pred_check_branch
          %538 = sbr.rel (%p536) target = $region48
        $region47: #{tpu_custom_call.1} parent=31 // pred_region
          %s539 = smul.u32 64, %s25
          %s540 = ssub.s32 260, %s539
          %p541 = scmp.lt.s32.totalorder %s540, 64
          %s542 = scalar_select %p541, %s540, 64
          %s543 = smul.u32 128, %s542
          %s545 = ssub.s32 8192, %s543
          %546 = vsyncadd %s532, %s545
          %p547 = scmp.ne.s32.totalorder 0, %s543
          %s548 = sadd.s32 %s26, %s539
          %s549 = smul.addr %s548, 128
          %s550 = scalar_lea.hbm %s3, %s549
          %s551 = smul.u32 8, %s542
          %s552 = sshll.u32 %s535, 4
          %s553 = int_to_ptr.vmem [resolvable:$true] %s552
          %s554 = sshll.u32 %s551, 4
          %558 = dma.vmem_to_hbm [thread:$0]  (%p547), %s553, %s554, %s550, %s532, 128, 128, 8
        $region48: #{tpu_custom_call.1} parent=31 // pred_fallthru
          _
      $region32: #{tpu_custom_call.1} parent=5 // pred_fallthru
        _
      %p559 = scmp.le.s32.totalorder 2, %s16
      // Predicated region
      $region49: #{tpu_custom_call.1} parent=5 // pred_check
        %p560 = pneg %p559
      $region50: #{tpu_custom_call.1} parent=5 // pred_check_branch
        %562 = sbr.rel (%p560) target = $region52
      $region51: #{tpu_custom_call.1} parent=5 // pred_region
        %s563 = ssub.s32 %s16, 2
        // Predicated region
        $region53: #{tpu_custom_call.1} parent=51 // pred_check
          %p564 = pneg %p139
        $region54: #{tpu_custom_call.1} parent=51 // pred_check_branch
          %566 = sbr.rel (%p564) target = $region56
        $region55: #{tpu_custom_call.1} parent=51 // pred_region
          %s567 = sand.u32 %s124, 1
          %s568 = scalar_lea.sflag [#allocation4], %s567
          %s569 = sand.u32 %s124, 1
          %s570 = smul.addr %s569, 512
          %s571 = scalar_lea.vmem [#allocation8], %s570
          %572 = dma.done %s568, 8192
        $region56: #{tpu_custom_call.1} parent=51 // pred_fallthru
          _
      $region52: #{tpu_custom_call.1} parent=5 // pred_fallthru
        _
    $region6: #{tpu_custom_call.1} parent=1 // loop_footer
      %s20 = sadd.s32 1, %s16
    $region7: #{tpu_custom_call.1} parent=1 // loop_footer_branch
      %15 = sbr.rel target = $region3
    $region8: #{tpu_custom_call.1} parent=1 // loop_exit
      _
    %573 = vsyncpa [#allocation3], 1
    %s574 = scalar_lea.sflag [#allocation3], 1
    %575 = vsyncpa %s574, 1
    %576 = vsyncpa [#allocation6], 1
    %577 = vsyncpa [#allocation4], 1
    %s578 = scalar_lea.sflag [#allocation4], 1
    %579 = vsyncpa %s578, 1

</llo_original>
